<compile_context>
chip_gen: v7x
topology: tpu7x:2x2x1
jax: 0.10.0
libtpu: 0.0.40
codegen_flags: <defaults>
</compile_context>

<pallas_src>
import functools

import jax
import jax.numpy as jnp
from jax.experimental import pallas as pl
from jax.experimental.pallas import tpu as pltpu

LN_EPS = 1e-5


def _round_up(n, m):
    return ((n + m - 1) // m) * m


def _layernorm_f32(x, gamma, beta):
    """LayerNorm over the last axis, statistics in f32."""
    x = x.astype(jnp.float32)
    mean = jnp.mean(x, axis=-1, keepdims=True)
    centered = x - mean
    var = jnp.mean(centered * centered, axis=-1, keepdims=True)
    xn = centered * jax.lax.rsqrt(var + LN_EPS)
    return xn * gamma.astype(jnp.float32) + beta.astype(jnp.float32)


def ln_linear_fused_kernel(x_ref, gamma_ref, beta_ref, wt_ref, b_ref, o_ref):
    """Grid = (row_blocks,).  Whole W.T resident; LN fused directly into the matmul.

    x_ref:      (TR, D)   row tile of the flattened input
    gamma/beta: (1, D)    LayerNorm affine params
    wt_ref:     (D, D_out) full transposed weight
    b_ref:      (1, D_out) bias
    o_ref:      (TR, D_out)
    """
    xn = _layernorm_f32(x_ref[...], gamma_ref[...], beta_ref[...])
    # MXU runs in the weight's native dtype (bf16 weights -> bf16 MXU), f32 accumulate.
    y = jnp.dot(xn.astype(wt_ref.dtype), wt_ref[...],
                preferred_element_type=jnp.float32)
    o_ref[...] = (y + b_ref[...].astype(jnp.float32)).astype(o_ref.dtype)


def ln_linear_coltile_kernel(x_ref, gamma_ref, beta_ref, wt_ref, b_ref, o_ref, xn_ref):
    """Grid = (row_blocks, col_blocks); col axis innermost ("arbitrary").

    LayerNorm is computed once per row tile (only on col block j == 0) into the
    VMEM scratch xn_ref (TR, D) and reused across all column blocks.
    """
    @pl.when(pl.program_id(1) == 0)
    def _():
        xn = _layernorm_f32(x_ref[...], gamma_ref[...], beta_ref[...])
        xn_ref[...] = xn.astype(xn_ref.dtype)

    y = jnp.dot(xn_ref[...], wt_ref[...], preferred_element_type=jnp.float32)
    o_ref[...] = (y + b_ref[...].astype(jnp.float32)).astype(o_ref.dtype)


@functools.partial(jax.jit, static_argnames=("row_tile", "col_tile"))
def linear_encoder_forward(inputs_embeds, gamma, beta, weight, bias, *,
                           row_tile=256, col_tile=None):
    """inputs_embeds: (B, S, D); weight: (D_out, D_in) PyTorch layout; bias: (D_out,).

    row_tile: main perf knob (128-256 v5e, 256-512 v6e/v7x); clamped for small inputs.
    col_tile: optional output-column tile (multiple of 128 dividing d_model) — shrinks
              the resident weight block for very large d_model.
    """
    B, S, D = inputs_embeds.shape
    D_out, D_in = weight.shape
    assert D_in == D, "weight in_features must equal d_model"

    R = B * S
    # Clamp the row tile for small inputs; keep it sublane(8)-aligned.
    tr = min(row_tile, _round_up(R, 8))
    R_pad = _round_up(R, tr)

    tn = D_out if col_tile is None else col_tile
    assert tn == D_out or (D_out % tn == 0 and tn % 128 == 0), \
        "col_tile must divide d_model and be a multiple of 128"
    n_col = D_out // tn

    x2d = inputs_embeds.reshape(R, D)
    if R_pad != R:
        # Ragged tail: pad with zeros (LayerNorm of a zero row is finite), slice later.
        x2d = jnp.pad(x2d, ((0, R_pad - R), (0, 0)))

    wt = weight.T                        # (D_in, D_out)
    gamma2 = gamma.reshape(1, D)
    beta2 = beta.reshape(1, D)
    bias2 = bias.reshape(1, D_out)

    # MXU / scratch dtype follows the weight dtype (bf16 weights -> bf16 MXU path).
    compute_dtype = weight.dtype

    cost = pl.CostEstimate(
        flops=2 * R_pad * D * D_out + 10 * R_pad * D,
        transcendentals=R_pad,  # one rsqrt per row
        bytes_accessed=(x2d.size * x2d.dtype.itemsize
                        + wt.size * wt.dtype.itemsize
                        + bias2.size * bias2.dtype.itemsize
                        + gamma2.size * gamma2.dtype.itemsize
                        + beta2.size * beta2.dtype.itemsize
                        + R_pad * D_out * inputs_embeds.dtype.itemsize),
    )
    compiler_params = pltpu.CompilerParams(
        dimension_semantics=("parallel",) if n_col == 1 else ("parallel", "arbitrary"),
        vmem_limit_bytes=48 * 1024 * 1024,  # above the 16/32 MiB scoped defaults
    )

    # Grid-invariant operands: no point double-buffering them.
    invariant = pl.Buffered(1)

    if n_col == 1:
        # Whole weight resident; LN fused into the matmul, no scratch roundtrip.
        grid_spec = pltpu.PrefetchScalarGridSpec(
            num_scalar_prefetch=0,
            grid=(R_pad // tr,),
            in_specs=[
                pl.BlockSpec((tr, D), lambda i: (i, 0)),                    # x row tile
                pl.BlockSpec((1, D), lambda i: (0, 0), pipeline_mode=invariant),   # gamma
                pl.BlockSpec((1, D), lambda i: (0, 0), pipeline_mode=invariant),   # beta
                pl.BlockSpec((D, D_out), lambda i: (0, 0), pipeline_mode=invariant),  # W.T
                pl.BlockSpec((1, D_out), lambda i: (0, 0), pipeline_mode=invariant),  # bias
            ],
            out_specs=pl.BlockSpec((tr, D_out), lambda i: (i, 0)),
        )
        kernel = ln_linear_fused_kernel
    else:
        # Column-tiled path: weight blocks stream along the inner ("arbitrary") axis;
        # LN result cached in VMEM scratch across column blocks.
        grid_spec = pltpu.PrefetchScalarGridSpec(
            num_scalar_prefetch=0,
            grid=(R_pad // tr, n_col),
            in_specs=[
                pl.BlockSpec((tr, D), lambda i, j: (i, 0)),                 # x row tile
                pl.BlockSpec((1, D), lambda i, j: (0, 0), pipeline_mode=invariant),  # gamma
                pl.BlockSpec((1, D), lambda i, j: (0, 0), pipeline_mode=invariant),  # beta
                pl.BlockSpec((D, tn), lambda i, j: (0, j)),                 # W.T block
                pl.BlockSpec((1, tn), lambda i, j: (0, j)),                 # bias block
            ],
            out_specs=pl.BlockSpec((tr, tn), lambda i, j: (i, j)),
            scratch_shapes=[pltpu.VMEM((tr, D), compute_dtype)],            # normalized rows
        )
        kernel = ln_linear_coltile_kernel

    out2d = pl.pallas_call(
        kernel,
        out_shape=jax.ShapeDtypeStruct((R_pad, D_out), inputs_embeds.dtype),
        grid_spec=grid_spec,
        compiler_params=compiler_params,
        cost_estimate=cost,
    )(x2d, gamma2, beta2, wt, bias2)

    out = out2d[:R].reshape(B, S, D_out)
    # PyTorch forward also returns torch.tensor(0) (pure glue, not kernel work).
    return out, jnp.array(0, dtype=jnp.int32)


def reference_forward(inputs_embeds, gamma, beta, weight, bias):
    x = inputs_embeds.astype(jnp.float32)
    mean = jnp.mean(x, axis=-1, keepdims=True)
    var = jnp.mean((x - mean) ** 2, axis=-1, keepdims=True)
    xn = (x - mean) / jnp.sqrt(var + LN_EPS)
    xn = xn * gamma + beta
    return jnp.einsum("bsd,od->bso", xn, weight) + bias


if __name__ == "__main__":
    # Small shapes consistent with the module: (batch, seq, d_model).
    B, S, D = 2, 8, 32
    key = jax.random.PRNGKey(0)
    kx, kw, kb = jax.random.split(key, 3)

    inputs_embeds = jax.random.normal(kx, (B, S, D), dtype=jnp.float32)

    # Deterministic parameter init (LayerNorm: ones/zeros; Linear: uniform-ish).
    gamma = jnp.ones((D,), dtype=jnp.float32)
    beta = jnp.zeros((D,), dtype=jnp.float32)
    bound = 1.0 / (D ** 0.5)
    weight = jax.random.uniform(kw, (D, D), minval=-bound, maxval=bound,
                                dtype=jnp.float32)   # (out_features, in_features)
    bias = jax.random.uniform(kb, (D,), minval=-bound, maxval=bound,
                              dtype=jnp.float32)

    out, flag = linear_encoder_forward(inputs_embeds, gamma, beta, weight, bias)
    out = jax.block_until_ready(out)
    flag = jax.block_until_ready(flag)

    ref = reference_forward(inputs_embeds, gamma, beta, weight, bias)
    assert out.shape == (B, S, D)
    assert int(flag) == 0
    assert jnp.allclose(out, ref, atol=1e-4, rtol=1e-4), "mismatch vs reference"

    # Ragged / padded row count validates the non-divisible path.
    B2, S2 = 3, 5
    x2 = jax.random.normal(kx, (B2, S2, D), dtype=jnp.float32)
    out2, _ = linear_encoder_forward(x2, gamma, beta, weight, bias)
    out2 = jax.block_until_ready(out2)
    ref2 = reference_forward(x2, gamma, beta, weight, bias)
    assert jnp.allclose(out2, ref2, atol=1e-4, rtol=1e-4), "mismatch (ragged) vs reference"

    # Column-tiled path (larger d_model, col_tile multiple of 128).
    D3 = 256
    kx3, kw3, kb3 = jax.random.split(jax.random.PRNGKey(1), 3)
    x3 = jax.random.normal(kx3, (2, 8, D3), dtype=jnp.float32)
    gamma3 = jnp.ones((D3,), dtype=jnp.float32)
    beta3 = jnp.zeros((D3,), dtype=jnp.float32)
    bound3 = 1.0 / (D3 ** 0.5)
    weight3 = jax.random.uniform(kw3, (D3, D3), minval=-bound3, maxval=bound3,
                                 dtype=jnp.float32)
    bias3 = jax.random.uniform(kb3, (D3,), minval=-bound3, maxval=bound3,
                               dtype=jnp.float32)
    out3, _ = linear_encoder_forward(x3, gamma3, beta3, weight3, bias3, col_tile=128)
    out3 = jax.block_until_ready(out3)
    ref3 = reference_forward(x3, gamma3, beta3, weight3, bias3)
    assert jnp.allclose(out3, ref3, atol=1e-4, rtol=1e-4), "mismatch (col-tiled) vs reference"

    print("KERNEL_OK")
</pallas_src>

<mosaic_0001>
module attributes {stable_mosaic.version = 11 : i64} {
  func.func @ln_linear_fused_kernel(%arg0: i32, %arg1: memref<16x32xf32, #tpu.memory_space<vmem>>, %arg2: memref<1x32xf32, #tpu.memory_space<vmem>>, %arg3: memref<1x32xf32, #tpu.memory_space<vmem>>, %arg4: memref<32x32xf32, #tpu.memory_space<vmem>>, %arg5: memref<1x32xf32, #tpu.memory_space<vmem>>, %arg6: memref<16x32xf32, #tpu.memory_space<vmem>>) attributes {dimension_semantics = [#tpu.dimension_semantics<parallel>], iteration_bounds = array<i64: 1>, scalar_prefetch = 0 : i64, scratch_operands = 0 : i64, tpu.core_type = #tpu.core_type<tc>, window_params = [{transform_indices = @transform_0, window_bounds = array<i64: 16, 32>}, {pipeline_mode = #tpu.pipeline_mode<synchronous>, transform_indices = @transform_1, window_bounds = array<i64: 1, 32>}, {pipeline_mode = #tpu.pipeline_mode<synchronous>, transform_indices = @transform_2, window_bounds = array<i64: 1, 32>}, {pipeline_mode = #tpu.pipeline_mode<synchronous>, transform_indices = @transform_3, window_bounds = array<i64: 32, 32>}, {pipeline_mode = #tpu.pipeline_mode<synchronous>, transform_indices = @transform_4, window_bounds = array<i64: 1, 32>}, {transform_indices = @transform_5, window_bounds = array<i64: 16, 32>}]} {
    %c0 = arith.constant 0 : index
    %c0_0 = arith.constant 0 : index
    %0 = vector.load %arg1[%c0, %c0_0] : memref<16x32xf32, #tpu.memory_space<vmem>>, vector<16x32xf32>
    %c0_1 = arith.constant 0 : index
    %c0_2 = arith.constant 0 : index
    %1 = vector.load %arg2[%c0_1, %c0_2] : memref<1x32xf32, #tpu.memory_space<vmem>>, vector<1x32xf32>
    %c0_3 = arith.constant 0 : index
    %c0_4 = arith.constant 0 : index
    %2 = vector.load %arg3[%c0_3, %c0_4] : memref<1x32xf32, #tpu.memory_space<vmem>>, vector<1x32xf32>
    %cst = arith.constant dense<0.000000e+00> : vector<16xf32>
    %3 = vector.multi_reduction <add>, %0, %cst [1] : vector<16x32xf32> to vector<16xf32>
    %4 = vector.shape_cast %3 : vector<16xf32> to vector<16x1xf32>
    %cst_5 = arith.constant 3.200000e+01 : f32
    %5 = vector.broadcast %cst_5 : f32 to vector<16x1xf32>
    %6 = arith.divf %4, %5 : vector<16x1xf32>
    %7 = vector.broadcast %6 : vector<16x1xf32> to vector<16x32xf32>
    %8 = arith.subf %0, %7 : vector<16x32xf32>
    %9 = arith.mulf %8, %8 : vector<16x32xf32>
    %cst_6 = arith.constant dense<0.000000e+00> : vector<16xf32>
    %10 = vector.multi_reduction <add>, %9, %cst_6 [1] : vector<16x32xf32> to vector<16xf32>
    %11 = vector.shape_cast %10 : vector<16xf32> to vector<16x1xf32>
    %cst_7 = arith.constant 3.200000e+01 : f32
    %12 = vector.broadcast %cst_7 : f32 to vector<16x1xf32>
    %13 = arith.divf %11, %12 : vector<16x1xf32>
    %cst_8 = arith.constant 9.99999974E-6 : f32
    %14 = vector.broadcast %cst_8 : f32 to vector<16x1xf32>
    %15 = arith.addf %13, %14 : vector<16x1xf32>
    %16 = math.rsqrt %15 : vector<16x1xf32>
    %17 = vector.broadcast %16 : vector<16x1xf32> to vector<16x32xf32>
    %18 = arith.mulf %8, %17 : vector<16x32xf32>
    %19 = vector.broadcast %1 : vector<1x32xf32> to vector<16x32xf32>
    %20 = arith.mulf %18, %19 : vector<16x32xf32>
    %21 = vector.broadcast %2 : vector<1x32xf32> to vector<16x32xf32>
    %22 = arith.addf %20, %21 : vector<16x32xf32>
    %c0_9 = arith.constant 0 : index
    %c0_10 = arith.constant 0 : index
    %23 = vector.load %arg4[%c0_9, %c0_10] : memref<32x32xf32, #tpu.memory_space<vmem>>, vector<32x32xf32>
    %cst_11 = arith.constant dense<0.000000e+00> : vector<16x32xf32>
    %24 = tpu.matmul %22, %23, %cst_11 {dimension_numbers = #tpu.dot_dimension_numbers<[1], [0], [0], [1], [0, 0, 1, 1], [], []>} : vector<16x32xf32>, vector<32x32xf32>, vector<16x32xf32> -> vector<16x32xf32>
    %c0_12 = arith.constant 0 : index
    %c0_13 = arith.constant 0 : index
    %25 = vector.load %arg5[%c0_12, %c0_13] : memref<1x32xf32, #tpu.memory_space<vmem>>, vector<1x32xf32>
    %26 = vector.broadcast %25 : vector<1x32xf32> to vector<16x32xf32>
    %27 = arith.addf %24, %26 : vector<16x32xf32>
    %c0_14 = arith.constant 0 : index
    %c0_15 = arith.constant 0 : index
    %28 = vector.load %arg6[%c0_14, %c0_15] : memref<16x32xf32, #tpu.memory_space<vmem>>, vector<16x32xf32>
    tpu.vector_store %arg6[%c0_14, %c0_15], %27 {strides = array<i32>} : memref<16x32xf32, #tpu.memory_space<vmem>>, vector<16x32xf32>,
    return
  }
  func.func @transform_0(%arg0: i32) -> (i32, i32) {
    %c0_i32 = arith.constant 0 : i32
    %c0_i32_0 = arith.constant 0 : i32
    return %arg0, %c0_i32 : i32, i32
  }
  func.func @transform_1(%arg0: i32) -> (i32, i32) {
    %c0_i32 = arith.constant 0 : i32
    %c0_i32_0 = arith.constant 0 : i32
    %c0_i32_1 = arith.constant 0 : i32
    return %c0_i32, %c0_i32_0 : i32, i32
  }
  func.func @transform_2(%arg0: i32) -> (i32, i32) {
    %c0_i32 = arith.constant 0 : i32
    %c0_i32_0 = arith.constant 0 : i32
    %c0_i32_1 = arith.constant 0 : i32
    return %c0_i32, %c0_i32_0 : i32, i32
  }
  func.func @transform_3(%arg0: i32) -> (i32, i32) {
    %c0_i32 = arith.constant 0 : i32
    %c0_i32_0 = arith.constant 0 : i32
    %c0_i32_1 = arith.constant 0 : i32
    return %c0_i32, %c0_i32_0 : i32, i32
  }
  func.func @transform_4(%arg0: i32) -> (i32, i32) {
    %c0_i32 = arith.constant 0 : i32
    %c0_i32_0 = arith.constant 0 : i32
    %c0_i32_1 = arith.constant 0 : i32
    return %c0_i32, %c0_i32_0 : i32, i32
  }
  func.func @transform_5(%arg0: i32) -> (i32, i32) {
    %c0_i32 = arith.constant 0 : i32
    %c0_i32_0 = arith.constant 0 : i32
    return %arg0, %c0_i32 : i32, i32
  }
}

</mosaic_0001>

<llo_original>
// kernel: linear_encoder_forward.1
$region0: #{linear_encoder_forward.1}
  #allocation0 [shape = 'u32[]', space=smem, size = 0x4, offset = 0x4, fixed_abs, tag = 'smem constant byte address 0x4 - core index']
  #allocation1 [shape = 'u32[144,128]{1,0:T(1,128)}', space=vmem, size = 0x12000, scoped, tag = 'internal scratch']
  %s0 = inlined_call_operand.vmem [shape: f32[16,32], index: 0, kind: input, shape index: {}]
  %s1 = inlined_call_operand.vmem [shape: f32[1,32], index: 1, kind: input, shape index: {}]
  %s2 = inlined_call_operand.vmem [shape: f32[1,32], index: 2, kind: input, shape index: {}]
  %s3 = inlined_call_operand.vmem [shape: f32[32,32], index: 3, kind: input, shape index: {}]
  %s4 = inlined_call_operand.vmem [shape: f32[1,32], index: 4, kind: input, shape index: {}]
  %s5 = inlined_call_operand.hbm [shape: f32[16,32], index: 5, kind: output, shape index: {}]
  %s6 = sld [smem:[#allocation0]]
  $region30: #{linear_encoder_forward.1} parent=0
    _
  %s8 = ssub.s32 1, %s6
  %s9 = scalar_select 0, %s8, %s6
  $region1: #{linear_encoder_forward.1} parent=0
    #allocation2 [shape = 'u8[8192]{0}', space=vmem, size = 0x2000, scoped, tag = 'output window, operand 0, single buffered']
    #allocation3 [shape = 's32[1]{0}', space=sflag, size = 0x4, scoped, tag = 'scoped memory for linear_encoder_forward.1']
    %10 = vsyncpa [#allocation3], 0
    // Predicated region
    $region2: #{linear_encoder_forward.1} parent=1 // pred_check
      _
    $region3: #{linear_encoder_forward.1} parent=1 // pred_check_branch
      %12 = sbr.rel (0) target = $region5
    $region4: #{linear_encoder_forward.1} parent=1 // pred_region
      _
    $region5: #{linear_encoder_forward.1} parent=1 // pred_fallthru
      _
    // Predicated region
    $region6: #{linear_encoder_forward.1} parent=1 // pred_check
      _
    $region7: #{linear_encoder_forward.1} parent=1 // pred_check_branch
      %14 = sbr.rel (0) target = $region9
    $region8: #{linear_encoder_forward.1} parent=1 // pred_region
      _
    $region9: #{linear_encoder_forward.1} parent=1 // pred_fallthru
      _
    // Predicated region
    $region10: #{linear_encoder_forward.1} parent=1 // pred_check
      _
    $region11: #{linear_encoder_forward.1} parent=1 // pred_check_branch
      %16 = sbr.rel (0) target = $region13
    $region12: #{linear_encoder_forward.1} parent=1 // pred_region
      _
    $region13: #{linear_encoder_forward.1} parent=1 // pred_fallthru
      _
    // Predicated region
    $region14: #{linear_encoder_forward.1} parent=1 // pred_check
      _
    $region15: #{linear_encoder_forward.1} parent=1 // pred_check_branch
      %18 = sbr.rel (0) target = $region17
    $region16: #{linear_encoder_forward.1} parent=1 // pred_region
      _
    $region17: #{linear_encoder_forward.1} parent=1 // pred_fallthru
      _
    // Predicated region
    $region18: #{linear_encoder_forward.1} parent=1 // pred_check
      _
    $region19: #{linear_encoder_forward.1} parent=1 // pred_check_branch
      %20 = sbr.rel (0) target = $region21
    $region20: #{linear_encoder_forward.1} parent=1 // pred_region
      _
    $region21: #{linear_encoder_forward.1} parent=1 // pred_fallthru
      _
    %v21 = vld [vmem:[%s0] sm:$0xff]
    %v22 = vld [vmem:[%s0 + $0x8] sm:$0xff]
    %v23 = vld [vmem:[%s1] sm:$0x1]
    %v24 = vld [vmem:[%s2] sm:$0x1]
    %vm25 = vcmask 261120
    %v26 = vsel %vm25, %v21, 0.0
    %27 = vadd.xlane.f32.xlu0 %v26
    %v28 = vpop.xlane.xlu0 %27
    %v29 = vsel %vm25, %v22, 0.0
    %30 = vadd.xlane.f32.xlu0 %v29
    %v31 = vpop.xlane.xlu0 %30
    %v32 = vrcp.pop 32.0
    %v33 = vmul.f32 %v28, %v32
    %v34 = vmul.f32 %v31, %v32
    %v35 = vsub.f32 %v21, %v33
    %v36 = vsub.f32 %v22, %v34
    %v37 = vmul.f32 %v35, %v35
    %v38 = vmul.f32 %v36, %v36
    %v39 = vsel %vm25, %v37, 0.0
    %40 = vadd.xlane.f32.xlu0 %v39
    %v41 = vpop.xlane.xlu0 %40
    %v42 = vsel %vm25, %v38, 0.0
    %43 = vadd.xlane.f32.xlu0 %v42
    %v44 = vpop.xlane.xlu0 %43
    %v45 = vmul.f32 %v41, %v32
    %v46 = vmul.f32 %v44, %v32
    %v47 = vadd.f32 %v45, 1e-05
    %v48 = vadd.f32 %v46, 1e-05
    %v49 = vrsqrt.pop %v47
    %v50 = vrsqrt.pop %v48
    %v51 = vmul.f32 %v35, %v49
    %v52 = vmul.f32 %v36, %v50
    %v54 = vlaneseq
    %v55 = vshrl.u32 %v54, 7
    %v56 = vsub.s32 0, %v55
    %v57 = vrot.slane %v23, %v56
    %v59 = vmul.f32 %v51, %v57
    %v60 = vmul.f32 %v52, %v57
    %v62 = vlaneseq
    %v63 = vshrl.u32 %v62, 7
    %v64 = vsub.s32 0, %v63
    %v65 = vrot.slane %v24, %v64
    %v67 = vadd.f32 %v59, %v65
    %v68 = vadd.f32 %v60, %v65
    %v69 = vld [vmem:[%s3] sm:$0xff]
    %v70 = vld [vmem:[%s3 + $0x8] sm:$0xff]
    %v71 = vld [vmem:[%s3 + $0x10] sm:$0xff]
    %v72 = vld [vmem:[%s3 + $0x18] sm:$0xff]
    %v73 = vld [vmem:[%s4] sm:$0x1]
    %v75 = vlaneseq
    %v76 = vshrl.u32 %v75, 7
    %v77 = vsub.s32 0, %v76
    %v78 = vrot.slane %v73, %v77
    %v81 = vsel %vm25, %v67, 0
    %v84 = vsel %vm25, %v68, 0
    %86 = vmatprep.subr.mxu0 0.0
    %87 = vmatpush1.msra.mxu0 %v69
    %88 = vmatprep.subr.mxu0 0.0
    %89 = vmatpush1.msra.mxu0 %v70
    %90 = vmatprep.subr.mxu0 0.0
    %91 = vmatpush1.msra.mxu0 %v71
    %92 = vmatprep.subr.mxu0 0.0
    %93 = vmatpush1.msra.mxu0 %v72
    %94 = vmatprep.subr.mxu0 0.0
    %95 = vmatpush1.msra.mxu0 0.0
    %96 = vmatprep.subr.mxu0 0.0
    %97 = vmatpush1.msra.mxu0 0.0
    %98 = vmatprep.subr.mxu0 0.0
    %99 = vmatpush1.msra.mxu0 0.0
    %100 = vmatprep.subr.mxu0 0.0
    %101 = vmatpush1.msra.mxu0 0.0
    %102 = vmatprep.subr.mxu0 0.0
    %103 = vmatpush1.msra.mxu0 0.0
    %104 = vmatprep.subr.mxu0 0.0
    %105 = vmatpush1.msra.mxu0 0.0
    %106 = vmatprep.subr.mxu0 0.0
    %107 = vmatpush1.msra.mxu0 0.0
    %108 = vmatprep.subr.mxu0 0.0
    %109 = vmatpush1.msra.mxu0 0.0
    %110 = vmatprep.subr.mxu0 0.0
    %111 = vmatpush1.msra.mxu0 0.0
    %112 = vmatprep.subr.mxu0 0.0
    %113 = vmatpush1.msra.mxu0 0.0
    %114 = vmatprep.subr.mxu0 0.0
    %115 = vmatpush1.msra.mxu0 0.0
    %116 = vmatprep.subr.mxu0 0.0
    %117 = vmatpush1.msra.mxu0 0.0
    %118 = vmatprep.subr.mxu0 0.0
    %119 = vmatpush1.msra.mxu0 0.0
    %120 = vmatprep.subr.mxu0 0.0
    %121 = vmatpush1.msra.mxu0 0.0
    %122 = vmatprep.subr.mxu0 0.0
    %123 = vmatpush1.msra.mxu0 0.0
    %124 = vmatprep.subr.mxu0 0.0
    %125 = vmatpush1.msra.mxu0 0.0
    %126 = vmatprep.subr.mxu0 0.0
    %127 = vmatpush1.msra.mxu0 0.0
    %128 = vmatprep.subr.mxu0 0.0
    %129 = vmatpush1.msra.mxu0 0.0
    %130 = vmatprep.subr.mxu0 0.0
    %131 = vmatpush1.msra.mxu0 0.0
    %132 = vmatprep.subr.mxu0 0.0
    %133 = vmatpush1.msra.mxu0 0.0
    %134 = vmatprep.subr.mxu0 0.0
    %135 = vmatpush1.msra.mxu0 0.0
    %136 = vmatprep.subr.mxu0 0.0
    %137 = vmatpush1.msra.mxu0 0.0
    %138 = vmatprep.subr.mxu0 0.0
    %139 = vmatpush1.msra.mxu0 0.0
    %140 = vmatprep.subr.mxu0 0.0
    %141 = vmatpush1.msra.mxu0 0.0
    %142 = vmatprep.subr.mxu0 0.0
    %143 = vmatpush1.msra.mxu0 0.0
    %144 = vmatprep.subr.mxu0 0.0
    %145 = vmatpush1.msra.mxu0 0.0
    %146 = vmatprep.subr.mxu0 0.0
    %147 = vmatpush1.msra.mxu0 0.0
    %148 = vmatprep.subr.mxu0 0.0
    %149 = vmatpush1.msra.mxu0 0.0
    %150 = vmatprep.mubr.f32.mxu0 0.0
    %151 = vmatmul.mubr.f32.gmra.mrb[0].mxu0 %v81
    %v152 = vpop.f32.mrb[0].mxu0
    %v153 = vadd.f32 %v78, %v152
    %v154 = vpop.f32.mrb[0].mxu0
    %155 = vmatprep.mubr.f32.mxu0 0.0
    %156 = vmatmul.mubr.f32.gmra.mrb[0].mxu0 %v84
    %v157 = vpop.f32.mrb[0].mxu0
    %v158 = vadd.f32 %v78, %v157
    %v159 = vpop.f32.mrb[0].mxu0
    %160 = vdwg.mxu0
    %161 = vst.msk [vmem:[#allocation2] sm:$0xff] %vm25, %v153
    %162 = vst.msk [vmem:[#allocation2 + $0x8] sm:$0xff] %vm25, %v158
    // Predicated region
    $region22: #{linear_encoder_forward.1} parent=1 // pred_check
      _
    $region23: #{linear_encoder_forward.1} parent=1 // pred_check_branch
      %164 = sbr.rel (0) target = $region25
    $region24: #{linear_encoder_forward.1} parent=1 // pred_region
      %s166 = ssub.s32 256, 256
      %167 = vsyncadd [#allocation3], %s166
      %s168 = sshll.u32 [#allocation2], 4
      %s169 = int_to_ptr.vmem [resolvable:$true] %s168
      %174 = dma.vmem_to_hbm [thread:$0]  %s169, 256, %s5, [#allocation3], 128, 128, 8
    $region25: #{linear_encoder_forward.1} parent=1 // pred_fallthru
      _
    // Predicated region
    $region26: #{linear_encoder_forward.1} parent=1 // pred_check
      _
    $region27: #{linear_encoder_forward.1} parent=1 // pred_check_branch
      %176 = sbr.rel (0) target = $region29
    $region28: #{linear_encoder_forward.1} parent=1 // pred_region
      %177 = dma.done [#allocation3], 256
    $region29: #{linear_encoder_forward.1} parent=1 // pred_fallthru
      _
    %178 = vsyncpa [#allocation3], 1

</llo_original>
